<compile_context>
chip_gen: v7x
topology: tpu7x:2x2x1
jax: 0.10.0
libtpu: 0.0.40
codegen_flags: <defaults>
</compile_context>

<pallas_src>
import functools

import jax
import jax.numpy as jnp
from jax.experimental import pallas as pl
from jax.experimental.pallas import tpu as pltpu


# ----------------------------------------------------------------------------
# Kernel: fused (block-diagonal) FFN + residual + custom LayerNorm per
# token tile.
# ----------------------------------------------------------------------------
def _ffn_kernel(x_ref, w1_ref, b1_ref, w2_ref, b2_ref, a2_ref, bln_ref,
                o_ref, *, eps):
    x = x_ref[...]                                   # keep model dtype for MXU

    # First fused layer: [TM, d_hid] @ [d_hid, d_ff] (block-diagonal weights).
    h = jnp.dot(x, w1_ref[...], preferred_element_type=jnp.float32)
    h = h + b1_ref[...].astype(jnp.float32)
    h = jnp.maximum(h, 0.0)
    # TODO(synk): FeatureDropout (relu_dropout / residual_dropout) is identity
    # at inference (training=False); per-batch feature masks are not ported.
    h = h.astype(x.dtype)                            # keep MXU on bf16 path if bf16

    # Second fused layer: [TM, d_ff] @ [d_ff, d_hid] + bias + residual.
    out = jnp.dot(h, w2_ref[...], preferred_element_type=jnp.float32)
    out = out + b2_ref[...].astype(jnp.float32) + x.astype(jnp.float32)

    # Custom layer norm (torch.std is unbiased -> divide by N-1, eps on sigma).
    d = out.shape[-1]
    mu = jnp.mean(out, axis=-1, keepdims=True)
    centered = out - mu
    var = jnp.sum(centered * centered, axis=-1, keepdims=True) * (1.0 / (d - 1))
    sigma = jnp.sqrt(var)
    inv = pl.reciprocal(sigma + eps, approx=False)   # exact; keeps 1e-4 tolerance
    ln = centered * inv
    ln = ln * a2_ref[...].astype(jnp.float32) + bln_ref[...].astype(jnp.float32)
    o_ref[...] = ln.astype(o_ref.dtype)


# ----------------------------------------------------------------------------
# Tile-size selection: largest power-of-two row tile whose working set
# (double-buffered activations + resident weights + f32 temporaries) fits a
# conservative VMEM budget valid on v5e/v6e/v7x.
# ----------------------------------------------------------------------------
def _pick_tile_rows(T, d_hid, d_ff, act_itemsize, w_itemsize,
                    vmem_budget=40 * 1024 * 1024):
    weights = 2 * 2 * d_hid * d_ff * w_itemsize      # W1 + W2, double-buffered
    tm, best = 8, 8
    while tm <= 1024:
        act = 2 * 2 * tm * d_hid * act_itemsize      # x + out tiles, double-buffered
        temps = tm * d_ff * 4 + 3 * tm * d_hid * 4   # f32 h + f32 out/centered/ln
        if weights + act + temps <= vmem_budget:
            best = tm
        tm *= 2
    if T <= best:
        return T          # single row block == full extent (always legal)
    return best           # multiple of 8; last grid block may be partial


# ----------------------------------------------------------------------------
# Wrapper
# ----------------------------------------------------------------------------
def partitioned_ffn(x, params, *, d_content, eps=1e-3):
    T, d_hid = x.shape
    w1c, b1c, w1p, b1p, w2c, b2c, w2p, b2p, a2, bln = params
    dff2 = w1c.shape[1]
    d_ff = 2 * dff2
    wdtype = w1c.dtype

    # Fuse partitioned branches into block-diagonal weights (done once, in HBM;
    # in a real model these would be precomputed).  Zero blocks guarantee no
    # cross-talk between content and positional features.
    W1 = jnp.zeros((d_hid, d_ff), wdtype)
    W1 = W1.at[:d_content, :dff2].set(w1c)
    W1 = W1.at[d_content:, dff2:].set(w1p)
    b1 = jnp.concatenate([b1c, b1p], axis=-1)
    W2 = jnp.zeros((d_ff, d_hid), wdtype)
    W2 = W2.at[:dff2, :d_content].set(w2c)
    W2 = W2.at[dff2:, d_content:].set(w2p)
    b2 = jnp.concatenate([b2c, b2p], axis=-1)

    act_itemsize = jnp.dtype(x.dtype).itemsize
    w_itemsize = jnp.dtype(wdtype).itemsize
    tm = _pick_tile_rows(T, d_hid, d_ff, act_itemsize, w_itemsize)
    grid = (pl.cdiv(T, tm),)

    row_map = lambda i: (i, 0)
    const_map = lambda i: (0, 0)
    in_specs = [
        pl.BlockSpec((tm, d_hid), row_map),      # x (token tile)
        pl.BlockSpec((d_hid, d_ff), const_map),  # W1 (resident)
        pl.BlockSpec((1, d_ff), const_map),      # b1
        pl.BlockSpec((d_ff, d_hid), const_map),  # W2 (resident)
        pl.BlockSpec((1, d_hid), const_map),     # b2
        pl.BlockSpec((1, d_hid), const_map),     # a_2
        pl.BlockSpec((1, d_hid), const_map),     # b_2 (LN shift)
    ]
    out_spec = pl.BlockSpec((tm, d_hid), row_map)

    # Explicit VMEM budget (double-buffered tiles + resident weights + temps),
    # capped below v7x's 64 MiB physical VMEM.
    vmem_bytes = (2 * 2 * tm * d_hid * act_itemsize
                  + 2 * 2 * d_hid * d_ff * w_itemsize
                  + tm * d_ff * 4 + 3 * tm * d_hid * 4
                  + (1 << 20))
    vmem_bytes = int(min(max(vmem_bytes, 4 << 20), 48 << 20))

    cost = pl.CostEstimate(
        flops=4 * T * d_hid * d_ff + 12 * T * d_hid,
        transcendentals=2 * T,
        bytes_accessed=(2 * T * d_hid * act_itemsize
                        + 2 * d_hid * d_ff * w_itemsize
                        + 4 * d_hid * w_itemsize),
    )

    kernel = functools.partial(_ffn_kernel, eps=eps)
    return pl.pallas_call(
        kernel,
        out_shape=jax.ShapeDtypeStruct((T, d_hid), x.dtype),
        grid=grid,
        in_specs=in_specs,
        out_specs=out_spec,
        compiler_params=pltpu.CompilerParams(
            dimension_semantics=("parallel",),
            vmem_limit_bytes=vmem_bytes,
        ),
        cost_estimate=cost,
    )(x, W1, b1, W2, b2, a2, bln)


# ----------------------------------------------------------------------------
# Pure-JAX reference (mirrors the PyTorch forward in eval mode, using the
# original *partitioned* weights — also validates the block-diagonal fusion).
# ----------------------------------------------------------------------------
def reference_ffn(x, params, *, d_content, eps=1e-3):
    w1c, b1c, w1p, b1p, w2c, b2c, w2p, b2p, a2, bln = params
    residual = x
    xc = x[:, :d_content]
    xp = x[:, d_content:]
    oc = jnp.maximum(xc @ w1c + b1c, 0.0) @ w2c + b2c
    op = jnp.maximum(xp @ w1p + b1p, 0.0) @ w2p + b2p
    out = jnp.concatenate([oc, op], axis=-1) + residual
    d = out.shape[-1]
    mu = jnp.mean(out, axis=-1, keepdims=True)
    c = out - mu
    sigma = jnp.sqrt(jnp.sum(c * c, axis=-1, keepdims=True) / (d - 1))
    return c / (sigma + eps) * a2 + bln


def _linear_params(key, fan_in, fan_out):
    # PyTorch nn.Linear default init: U(-1/sqrt(fan_in), 1/sqrt(fan_in)),
    # stored transposed as (fan_in, fan_out) so y = x @ W + b.
    kw, kb = jax.random.split(key)
    bound = 1.0 / (fan_in ** 0.5)
    w = jax.random.uniform(kw, (fan_in, fan_out), jnp.float32, -bound, bound)
    b = jax.random.uniform(kb, (1, fan_out), jnp.float32, -bound, bound)
    return w, b


if __name__ == "__main__":
    # Small shapes consistent with the module: tokens T=8, d_hid=32,
    # d_positional=8 (so d_content=24), d_ff=64 (branch width d_ff//2=32).
    T = 8
    d_hid = 32
    d_positional = 8
    d_ff = 64
    d_content = d_hid - d_positional
    dff2 = d_ff // 2

    root = jax.random.PRNGKey(0)
    kx, k1c, k1p, k2c, k2p = jax.random.split(root, 5)

    x = jax.random.normal(kx, (T, d_hid), jnp.float32)

    w1c, b1c = _linear_params(k1c, d_content, dff2)
    w1p, b1p = _linear_params(k1p, d_positional, dff2)
    w2c, b2c = _linear_params(k2c, dff2, d_content)
    w2p, b2p = _linear_params(k2p, dff2, d_positional)
    a2 = jnp.ones((1, d_hid), jnp.float32)    # LayerNormalization.a_2
    bln = jnp.zeros((1, d_hid), jnp.float32)  # LayerNormalization.b_2

    params = (w1c, b1c, w1p, b1p, w2c, b2c, w2p, b2p, a2, bln)

    out = partitioned_ffn(x, params, d_content=d_content)
    out = jax.block_until_ready(out)

    ref = reference_ffn(x, params, d_content=d_content)
    ref = jax.block_until_ready(ref)

    if not jnp.allclose(out, ref, atol=1e-4, rtol=1e-4):
        raise AssertionError("Pallas kernel does not match reference")

    print("KERNEL_OK")
</pallas_src>

<mosaic_0001>
module attributes {stable_mosaic.version = 11 : i64} {
  func.func @_ffn_kernel(%arg0: i32, %arg1: memref<8x32xf32, #tpu.memory_space<vmem>>, %arg2: memref<32x64xf32, #tpu.memory_space<vmem>>, %arg3: memref<1x64xf32, #tpu.memory_space<vmem>>, %arg4: memref<64x32xf32, #tpu.memory_space<vmem>>, %arg5: memref<1x32xf32, #tpu.memory_space<vmem>>, %arg6: memref<1x32xf32, #tpu.memory_space<vmem>>, %arg7: memref<1x32xf32, #tpu.memory_space<vmem>>, %arg8: memref<8x32xf32, #tpu.memory_space<vmem>>) attributes {dimension_semantics = [#tpu.dimension_semantics<parallel>], iteration_bounds = array<i64: 1>, scalar_prefetch = 0 : i64, scratch_operands = 0 : i64, tpu.core_type = #tpu.core_type<tc>, window_params = [{transform_indices = @transform_0, window_bounds = array<i64: 8, 32>}, {pipeline_mode = #tpu.pipeline_mode<synchronous>, transform_indices = @transform_1, window_bounds = array<i64: 32, 64>}, {pipeline_mode = #tpu.pipeline_mode<synchronous>, transform_indices = @transform_2, window_bounds = array<i64: 1, 64>}, {pipeline_mode = #tpu.pipeline_mode<synchronous>, transform_indices = @transform_3, window_bounds = array<i64: 64, 32>}, {pipeline_mode = #tpu.pipeline_mode<synchronous>, transform_indices = @transform_4, window_bounds = array<i64: 1, 32>}, {pipeline_mode = #tpu.pipeline_mode<synchronous>, transform_indices = @transform_5, window_bounds = array<i64: 1, 32>}, {pipeline_mode = #tpu.pipeline_mode<synchronous>, transform_indices = @transform_6, window_bounds = array<i64: 1, 32>}, {transform_indices = @transform_7, window_bounds = array<i64: 8, 32>}]} {
    %c0 = arith.constant 0 : index
    %c0_0 = arith.constant 0 : index
    %0 = vector.load %arg1[%c0, %c0_0] : memref<8x32xf32, #tpu.memory_space<vmem>>, vector<8x32xf32>
    %c0_1 = arith.constant 0 : index
    %c0_2 = arith.constant 0 : index
    %1 = vector.load %arg2[%c0_1, %c0_2] : memref<32x64xf32, #tpu.memory_space<vmem>>, vector<32x64xf32>
    %cst = arith.constant dense<0.000000e+00> : vector<8x64xf32>
    %2 = tpu.matmul %0, %1, %cst {dimension_numbers = #tpu.dot_dimension_numbers<[1], [0], [0], [1], [0, 0, 1, 1], [], []>} : vector<8x32xf32>, vector<32x64xf32>, vector<8x64xf32> -> vector<8x64xf32>
    %c0_3 = arith.constant 0 : index
    %c0_4 = arith.constant 0 : index
    %3 = vector.load %arg3[%c0_3, %c0_4] : memref<1x64xf32, #tpu.memory_space<vmem>>, vector<1x64xf32>
    %4 = vector.broadcast %3 : vector<1x64xf32> to vector<8x64xf32>
    %5 = arith.addf %2, %4 : vector<8x64xf32>
    %cst_5 = arith.constant 0.000000e+00 : f32
    %6 = vector.broadcast %cst_5 : f32 to vector<8x64xf32>
    %7 = arith.maximumf %5, %6 : vector<8x64xf32>
    %c0_6 = arith.constant 0 : index
    %c0_7 = arith.constant 0 : index
    %8 = vector.load %arg4[%c0_6, %c0_7] : memref<64x32xf32, #tpu.memory_space<vmem>>, vector<64x32xf32>
    %cst_8 = arith.constant dense<0.000000e+00> : vector<8x32xf32>
    %9 = tpu.matmul %7, %8, %cst_8 {dimension_numbers = #tpu.dot_dimension_numbers<[1], [0], [0], [1], [0, 0, 1, 1], [], []>} : vector<8x64xf32>, vector<64x32xf32>, vector<8x32xf32> -> vector<8x32xf32>
    %c0_9 = arith.constant 0 : index
    %c0_10 = arith.constant 0 : index
    %10 = vector.load %arg5[%c0_9, %c0_10] : memref<1x32xf32, #tpu.memory_space<vmem>>, vector<1x32xf32>
    %11 = vector.broadcast %10 : vector<1x32xf32> to vector<8x32xf32>
    %12 = arith.addf %9, %11 : vector<8x32xf32>
    %13 = arith.addf %12, %0 : vector<8x32xf32>
    %cst_11 = arith.constant dense<0.000000e+00> : vector<8xf32>
    %14 = vector.multi_reduction <add>, %13, %cst_11 [1] : vector<8x32xf32> to vector<8xf32>
    %15 = vector.shape_cast %14 : vector<8xf32> to vector<8x1xf32>
    %cst_12 = arith.constant 3.200000e+01 : f32
    %16 = vector.broadcast %cst_12 : f32 to vector<8x1xf32>
    %17 = arith.divf %15, %16 : vector<8x1xf32>
    %18 = vector.broadcast %17 : vector<8x1xf32> to vector<8x32xf32>
    %19 = arith.subf %13, %18 : vector<8x32xf32>
    %20 = arith.mulf %19, %19 : vector<8x32xf32>
    %cst_13 = arith.constant dense<0.000000e+00> : vector<8xf32>
    %21 = vector.multi_reduction <add>, %20, %cst_13 [1] : vector<8x32xf32> to vector<8xf32>
    %22 = vector.shape_cast %21 : vector<8xf32> to vector<8x1xf32>
    %cst_14 = arith.constant 0.0322580636 : f32
    %23 = vector.broadcast %cst_14 : f32 to vector<8x1xf32>
    %24 = arith.mulf %22, %23 : vector<8x1xf32>
    %25 = math.sqrt %24 : vector<8x1xf32>
    %cst_15 = arith.constant 1.000000e-03 : f32
    %26 = vector.broadcast %cst_15 : f32 to vector<8x1xf32>
    %27 = arith.addf %25, %26 : vector<8x1xf32>
    %28 = tpu.reciprocal %27 : vector<8x1xf32> -> vector<8x1xf32>
    %29 = vector.broadcast %28 : vector<8x1xf32> to vector<8x32xf32>
    %30 = arith.mulf %19, %29 : vector<8x32xf32>
    %c0_16 = arith.constant 0 : index
    %c0_17 = arith.constant 0 : index
    %31 = vector.load %arg6[%c0_16, %c0_17] : memref<1x32xf32, #tpu.memory_space<vmem>>, vector<1x32xf32>
    %32 = vector.broadcast %31 : vector<1x32xf32> to vector<8x32xf32>
    %33 = arith.mulf %30, %32 : vector<8x32xf32>
    %c0_18 = arith.constant 0 : index
    %c0_19 = arith.constant 0 : index
    %34 = vector.load %arg7[%c0_18, %c0_19] : memref<1x32xf32, #tpu.memory_space<vmem>>, vector<1x32xf32>
    %35 = vector.broadcast %34 : vector<1x32xf32> to vector<8x32xf32>
    %36 = arith.addf %33, %35 : vector<8x32xf32>
    %c0_20 = arith.constant 0 : index
    %c0_21 = arith.constant 0 : index
    %37 = vector.load %arg8[%c0_20, %c0_21] : memref<8x32xf32, #tpu.memory_space<vmem>>, vector<8x32xf32>
    tpu.vector_store %arg8[%c0_20, %c0_21], %36 {strides = array<i32>} : memref<8x32xf32, #tpu.memory_space<vmem>>, vector<8x32xf32>,
    return
  }
  func.func @transform_0(%arg0: i32) -> (i32, i32) {
    %c0_i32 = arith.constant 0 : i32
    %c0_i32_0 = arith.constant 0 : i32
    return %arg0, %c0_i32 : i32, i32
  }
  func.func @transform_1(%arg0: i32) -> (i32, i32) {
    %c0_i32 = arith.constant 0 : i32
    %c0_i32_0 = arith.constant 0 : i32
    %c0_i32_1 = arith.constant 0 : i32
    return %c0_i32, %c0_i32_0 : i32, i32
  }
  func.func @transform_2(%arg0: i32) -> (i32, i32) {
    %c0_i32 = arith.constant 0 : i32
    %c0_i32_0 = arith.constant 0 : i32
    %c0_i32_1 = arith.constant 0 : i32
    return %c0_i32, %c0_i32_0 : i32, i32
  }
  func.func @transform_3(%arg0: i32) -> (i32, i32) {
    %c0_i32 = arith.constant 0 : i32
    %c0_i32_0 = arith.constant 0 : i32
    %c0_i32_1 = arith.constant 0 : i32
    return %c0_i32, %c0_i32_0 : i32, i32
  }
  func.func @transform_4(%arg0: i32) -> (i32, i32) {
    %c0_i32 = arith.constant 0 : i32
    %c0_i32_0 = arith.constant 0 : i32
    %c0_i32_1 = arith.constant 0 : i32
    return %c0_i32, %c0_i32_0 : i32, i32
  }
  func.func @transform_5(%arg0: i32) -> (i32, i32) {
    %c0_i32 = arith.constant 0 : i32
    %c0_i32_0 = arith.constant 0 : i32
    %c0_i32_1 = arith.constant 0 : i32
    return %c0_i32, %c0_i32_0 : i32, i32
  }
  func.func @transform_6(%arg0: i32) -> (i32, i32) {
    %c0_i32 = arith.constant 0 : i32
    %c0_i32_0 = arith.constant 0 : i32
    %c0_i32_1 = arith.constant 0 : i32
    return %c0_i32, %c0_i32_0 : i32, i32
  }
  func.func @transform_7(%arg0: i32) -> (i32, i32) {
    %c0_i32 = arith.constant 0 : i32
    %c0_i32_0 = arith.constant 0 : i32
    return %arg0, %c0_i32 : i32, i32
  }
}

</mosaic_0001>

<llo_original>
// kernel: tpu_custom_call.1
$region0: #{tpu_custom_call.1}
  #allocation0 [shape = 'u32[]', space=smem, size = 0x4, offset = 0x4, fixed_abs, tag = 'smem constant byte address 0x4 - core index']
  #allocation1 [shape = 'u32[144,128]{1,0:T(1,128)}', space=vmem, size = 0x12000, scoped, tag = 'internal scratch']
  %s0 = inlined_call_operand.vmem [shape: f32[8,32], index: 0, kind: input, shape index: {}]
  %s1 = inlined_call_operand.vmem [shape: f32[32,64], index: 1, kind: input, shape index: {}]
  %s2 = inlined_call_operand.vmem [shape: f32[1,64], index: 2, kind: input, shape index: {}]
  %s3 = inlined_call_operand.vmem [shape: f32[64,32], index: 3, kind: input, shape index: {}]
  %s4 = inlined_call_operand.vmem [shape: f32[1,32], index: 4, kind: input, shape index: {}]
  %s5 = inlined_call_operand.vmem [shape: f32[1,32], index: 5, kind: input, shape index: {}]
  %s6 = inlined_call_operand.vmem [shape: f32[1,32], index: 6, kind: input, shape index: {}]
  %s7 = inlined_call_operand.hbm [shape: f32[8,32], index: 7, kind: output, shape index: {}]
  %s8 = sld [smem:[#allocation0]]
  $region38: #{tpu_custom_call.1} parent=0
    _
  %s10 = ssub.s32 1, %s8
  %s11 = scalar_select 0, %s10, %s8
  $region1: #{tpu_custom_call.1} parent=0
    #allocation2 [shape = 'u8[4096]{0}', space=vmem, size = 0x1000, scoped, tag = 'output window, operand 0, single buffered']
    #allocation3 [shape = 's32[1]{0}', space=sflag, size = 0x4, scoped, tag = 'scoped memory for tpu_custom_call.1']
    %12 = vsyncpa [#allocation3], 0
    // Predicated region
    $region2: #{tpu_custom_call.1} parent=1 // pred_check
      _
    $region3: #{tpu_custom_call.1} parent=1 // pred_check_branch
      %14 = sbr.rel (0) target = $region5
    $region4: #{tpu_custom_call.1} parent=1 // pred_region
      _
    $region5: #{tpu_custom_call.1} parent=1 // pred_fallthru
      _
    // Predicated region
    $region6: #{tpu_custom_call.1} parent=1 // pred_check
      _
    $region7: #{tpu_custom_call.1} parent=1 // pred_check_branch
      %16 = sbr.rel (0) target = $region9
    $region8: #{tpu_custom_call.1} parent=1 // pred_region
      _
    $region9: #{tpu_custom_call.1} parent=1 // pred_fallthru
      _
    // Predicated region
    $region10: #{tpu_custom_call.1} parent=1 // pred_check
      _
    $region11: #{tpu_custom_call.1} parent=1 // pred_check_branch
      %18 = sbr.rel (0) target = $region13
    $region12: #{tpu_custom_call.1} parent=1 // pred_region
      _
    $region13: #{tpu_custom_call.1} parent=1 // pred_fallthru
      _
    // Predicated region
    $region14: #{tpu_custom_call.1} parent=1 // pred_check
      _
    $region15: #{tpu_custom_call.1} parent=1 // pred_check_branch
      %20 = sbr.rel (0) target = $region17
    $region16: #{tpu_custom_call.1} parent=1 // pred_region
      _
    $region17: #{tpu_custom_call.1} parent=1 // pred_fallthru
      _
    // Predicated region
    $region18: #{tpu_custom_call.1} parent=1 // pred_check
      _
    $region19: #{tpu_custom_call.1} parent=1 // pred_check_branch
      %22 = sbr.rel (0) target = $region21
    $region20: #{tpu_custom_call.1} parent=1 // pred_region
      _
    $region21: #{tpu_custom_call.1} parent=1 // pred_fallthru
      _
    // Predicated region
    $region22: #{tpu_custom_call.1} parent=1 // pred_check
      _
    $region23: #{tpu_custom_call.1} parent=1 // pred_check_branch
      %24 = sbr.rel (0) target = $region25
    $region24: #{tpu_custom_call.1} parent=1 // pred_region
      _
    $region25: #{tpu_custom_call.1} parent=1 // pred_fallthru
      _
    // Predicated region
    $region26: #{tpu_custom_call.1} parent=1 // pred_check
      _
    $region27: #{tpu_custom_call.1} parent=1 // pred_check_branch
      %26 = sbr.rel (0) target = $region29
    $region28: #{tpu_custom_call.1} parent=1 // pred_region
      _
    $region29: #{tpu_custom_call.1} parent=1 // pred_fallthru
      _
    %v27 = vld [vmem:[%s0] sm:$0xff]
    %v28 = vld [vmem:[%s1] sm:$0xff]
    %v29 = vld [vmem:[%s1 + $0x8] sm:$0xff]
    %v30 = vld [vmem:[%s1 + $0x10] sm:$0xff]
    %v31 = vld [vmem:[%s1 + $0x18] sm:$0xff]
    %v32 = vld [vmem:[%s2] sm:$0x1]
    %v34 = vlaneseq
    %v35 = vshrl.u32 %v34, 7
    %v36 = vsub.s32 0, %v35
    %v37 = vrot.slane %v32, %v36
    %vm39 = vcmask 261120
    %v41 = vsel %vm39, %v27, 0
    %43 = vmatprep.subr.mxu0 0.0
    %44 = vmatpush1.msra.mxu0 %v28
    %45 = vmatprep.subr.mxu0 0.0
    %46 = vmatpush1.msra.mxu0 %v29
    %47 = vmatprep.subr.mxu0 0.0
    %48 = vmatpush1.msra.mxu0 %v30
    %49 = vmatprep.subr.mxu0 0.0
    %50 = vmatpush1.msra.mxu0 %v31
    %51 = vmatprep.subr.mxu0 0.0
    %52 = vmatpush1.msra.mxu0 0.0
    %53 = vmatprep.subr.mxu0 0.0
    %54 = vmatpush1.msra.mxu0 0.0
    %55 = vmatprep.subr.mxu0 0.0
    %56 = vmatpush1.msra.mxu0 0.0
    %57 = vmatprep.subr.mxu0 0.0
    %58 = vmatpush1.msra.mxu0 0.0
    %59 = vmatprep.subr.mxu0 0.0
    %60 = vmatpush1.msra.mxu0 0.0
    %61 = vmatprep.subr.mxu0 0.0
    %62 = vmatpush1.msra.mxu0 0.0
    %63 = vmatprep.subr.mxu0 0.0
    %64 = vmatpush1.msra.mxu0 0.0
    %65 = vmatprep.subr.mxu0 0.0
    %66 = vmatpush1.msra.mxu0 0.0
    %67 = vmatprep.subr.mxu0 0.0
    %68 = vmatpush1.msra.mxu0 0.0
    %69 = vmatprep.subr.mxu0 0.0
    %70 = vmatpush1.msra.mxu0 0.0
    %71 = vmatprep.subr.mxu0 0.0
    %72 = vmatpush1.msra.mxu0 0.0
    %73 = vmatprep.subr.mxu0 0.0
    %74 = vmatpush1.msra.mxu0 0.0
    %75 = vmatprep.subr.mxu0 0.0
    %76 = vmatpush1.msra.mxu0 0.0
    %77 = vmatprep.subr.mxu0 0.0
    %78 = vmatpush1.msra.mxu0 0.0
    %79 = vmatprep.subr.mxu0 0.0
    %80 = vmatpush1.msra.mxu0 0.0
    %81 = vmatprep.subr.mxu0 0.0
    %82 = vmatpush1.msra.mxu0 0.0
    %83 = vmatprep.subr.mxu0 0.0
    %84 = vmatpush1.msra.mxu0 0.0
    %85 = vmatprep.subr.mxu0 0.0
    %86 = vmatpush1.msra.mxu0 0.0
    %87 = vmatprep.subr.mxu0 0.0
    %88 = vmatpush1.msra.mxu0 0.0
    %89 = vmatprep.subr.mxu0 0.0
    %90 = vmatpush1.msra.mxu0 0.0
    %91 = vmatprep.subr.mxu0 0.0
    %92 = vmatpush1.msra.mxu0 0.0
    %93 = vmatprep.subr.mxu0 0.0
    %94 = vmatpush1.msra.mxu0 0.0
    %95 = vmatprep.subr.mxu0 0.0
    %96 = vmatpush1.msra.mxu0 0.0
    %97 = vmatprep.subr.mxu0 0.0
    %98 = vmatpush1.msra.mxu0 0.0
    %99 = vmatprep.subr.mxu0 0.0
    %100 = vmatpush1.msra.mxu0 0.0
    %101 = vmatprep.subr.mxu0 0.0
    %102 = vmatpush1.msra.mxu0 0.0
    %103 = vmatprep.subr.mxu0 0.0
    %104 = vmatpush1.msra.mxu0 0.0
    %105 = vmatprep.subr.mxu0 0.0
    %106 = vmatpush1.msra.mxu0 0.0
    %107 = vmatprep.mubr.f32.mxu0 0.0
    %108 = vmatmul.mubr.f32.gmra.mrb[0].mxu0 %v41
    %v109 = vpop.f32.mrb[0].mxu0
    %v110 = vadd.f32 %v37, %v109
    %v111 = vpop.f32.mrb[0].mxu0
    %112 = vdwg.mxu0
    %v113 = vmax.f32 %v110, 0.0
    %v114 = vld [vmem:[%s3] sm:$0xff]
    %v115 = vld [vmem:[%s3 + $0x8] sm:$0xff]
    %v116 = vld [vmem:[%s3 + $0x10] sm:$0xff]
    %v117 = vld [vmem:[%s3 + $0x18] sm:$0xff]
    %v118 = vld [vmem:[%s3 + $0x20] sm:$0xff]
    %v119 = vld [vmem:[%s3 + $0x28] sm:$0xff]
    %v120 = vld [vmem:[%s3 + $0x30] sm:$0xff]
    %v121 = vld [vmem:[%s3 + $0x38] sm:$0xff]
    %v122 = vld [vmem:[%s4] sm:$0x1]
    %v124 = vlaneseq
    %v125 = vshrl.u32 %v124, 7
    %v126 = vsub.s32 0, %v125
    %v127 = vrot.slane %v122, %v126
    %vm129 = vcmask 523264
    %v131 = vsel %vm129, %v113, 0
    %133 = vmatprep.subr.mxu0 0.0
    %134 = vmatpush1.msra.mxu0 %v114
    %135 = vmatprep.subr.mxu0 0.0
    %136 = vmatpush1.msra.mxu0 %v115
    %137 = vmatprep.subr.mxu0 0.0
    %138 = vmatpush1.msra.mxu0 %v116
    %139 = vmatprep.subr.mxu0 0.0
    %140 = vmatpush1.msra.mxu0 %v117
    %141 = vmatprep.subr.mxu0 0.0
    %142 = vmatpush1.msra.mxu0 %v118
    %143 = vmatprep.subr.mxu0 0.0
    %144 = vmatpush1.msra.mxu0 %v119
    %145 = vmatprep.subr.mxu0 0.0
    %146 = vmatpush1.msra.mxu0 %v120
    %147 = vmatprep.subr.mxu0 0.0
    %148 = vmatpush1.msra.mxu0 %v121
    %149 = vmatprep.subr.mxu0 0.0
    %150 = vmatpush1.msra.mxu0 0.0
    %151 = vmatprep.subr.mxu0 0.0
    %152 = vmatpush1.msra.mxu0 0.0
    %153 = vmatprep.subr.mxu0 0.0
    %154 = vmatpush1.msra.mxu0 0.0
    %155 = vmatprep.subr.mxu0 0.0
    %156 = vmatpush1.msra.mxu0 0.0
    %157 = vmatprep.subr.mxu0 0.0
    %158 = vmatpush1.msra.mxu0 0.0
    %159 = vmatprep.subr.mxu0 0.0
    %160 = vmatpush1.msra.mxu0 0.0
    %161 = vmatprep.subr.mxu0 0.0
    %162 = vmatpush1.msra.mxu0 0.0
    %163 = vmatprep.subr.mxu0 0.0
    %164 = vmatpush1.msra.mxu0 0.0
    %165 = vmatprep.subr.mxu0 0.0
    %166 = vmatpush1.msra.mxu0 0.0
    %167 = vmatprep.subr.mxu0 0.0
    %168 = vmatpush1.msra.mxu0 0.0
    %169 = vmatprep.subr.mxu0 0.0
    %170 = vmatpush1.msra.mxu0 0.0
    %171 = vmatprep.subr.mxu0 0.0
    %172 = vmatpush1.msra.mxu0 0.0
    %173 = vmatprep.subr.mxu0 0.0
    %174 = vmatpush1.msra.mxu0 0.0
    %175 = vmatprep.subr.mxu0 0.0
    %176 = vmatpush1.msra.mxu0 0.0
    %177 = vmatprep.subr.mxu0 0.0
    %178 = vmatpush1.msra.mxu0 0.0
    %179 = vmatprep.subr.mxu0 0.0
    %180 = vmatpush1.msra.mxu0 0.0
    %181 = vmatprep.subr.mxu0 0.0
    %182 = vmatpush1.msra.mxu0 0.0
    %183 = vmatprep.subr.mxu0 0.0
    %184 = vmatpush1.msra.mxu0 0.0
    %185 = vmatprep.subr.mxu0 0.0
    %186 = vmatpush1.msra.mxu0 0.0
    %187 = vmatprep.subr.mxu0 0.0
    %188 = vmatpush1.msra.mxu0 0.0
    %189 = vmatprep.subr.mxu0 0.0
    %190 = vmatpush1.msra.mxu0 0.0
    %191 = vmatprep.subr.mxu0 0.0
    %192 = vmatpush1.msra.mxu0 0.0
    %193 = vmatprep.subr.mxu0 0.0
    %194 = vmatpush1.msra.mxu0 0.0
    %195 = vmatprep.subr.mxu0 0.0
    %196 = vmatpush1.msra.mxu0 0.0
    %197 = vmatprep.mubr.f32.mxu0 0.0
    %198 = vmatmul.mubr.f32.gmra.mrb[0].mxu0 %v131
    %v199 = vpop.f32.mrb[0].mxu0
    %v200 = vadd.f32 %v127, %v199
    %v201 = vpop.f32.mrb[0].mxu0
    %202 = vdwg.mxu0
    %v203 = vadd.f32 %v200, %v27
    %v204 = vsel %vm39, %v203, 0.0
    %205 = vadd.xlane.f32.xlu0 %v204
    %v206 = vpop.xlane.xlu0 %205
    %v207 = vrcp.pop 32.0
    %v208 = vmul.f32 %v206, %v207
    %v209 = vsub.f32 %v203, %v208
    %v210 = vmul.f32 %v209, %v209
    %v211 = vsel %vm39, %v210, 0.0
    %212 = vadd.xlane.f32.xlu0 %v211
    %v213 = vpop.xlane.xlu0 %212
    %v214 = vmul.f32 %v213, 0.032258064
    %v215 = vrsqrt.pop %v214
    %v216 = vmul.f32 %v214, %v215
    %vm217 = vcmp.eq.f32.partialorder %v214, inf
    %v218 = vsel %vm217, %v214, %v216
    %vm219 = vcmp.eq.f32.partialorder %v214, 0.0
    %v220 = vand.u32 %v214, 2147483648
    %v221 = vsel %vm219, %v220, %v218
    %v222 = vadd.f32 %v221, 0.001
    %v223 = vrcp.pop %v222
    %v224 = vmul.f32 %v209, %v223
    %v225 = vld [vmem:[%s5] sm:$0x1]
    %v227 = vlaneseq
    %v228 = vshrl.u32 %v227, 7
    %v229 = vsub.s32 0, %v228
    %v230 = vrot.slane %v225, %v229
    %v232 = vmul.f32 %v224, %v230
    %v233 = vld [vmem:[%s6] sm:$0x1]
    %v235 = vlaneseq
    %v236 = vshrl.u32 %v235, 7
    %v237 = vsub.s32 0, %v236
    %v238 = vrot.slane %v233, %v237
    %v240 = vadd.f32 %v232, %v238
    %241 = vst.msk [vmem:[#allocation2] sm:$0xff] %vm39, %v240
    // Predicated region
    $region30: #{tpu_custom_call.1} parent=1 // pred_check
      _
    $region31: #{tpu_custom_call.1} parent=1 // pred_check_branch
      %243 = sbr.rel (0) target = $region33
    $region32: #{tpu_custom_call.1} parent=1 // pred_region
      %s245 = ssub.s32 128, 128
      %246 = vsyncadd [#allocation3], %s245
      %s248 = sshll.u32 [#allocation2], 4
      %s249 = int_to_ptr.vmem [resolvable:$true] %s248
      %251 = dma.vmem_to_hbm [thread:$0]  %s249, 128, %s7, [#allocation3]
    $region33: #{tpu_custom_call.1} parent=1 // pred_fallthru
      _
    // Predicated region
    $region34: #{tpu_custom_call.1} parent=1 // pred_check
      _
    $region35: #{tpu_custom_call.1} parent=1 // pred_check_branch
      %253 = sbr.rel (0) target = $region37
    $region36: #{tpu_custom_call.1} parent=1 // pred_region
      %254 = dma.done [#allocation3], 128
    $region37: #{tpu_custom_call.1} parent=1 // pred_fallthru
      _
    %255 = vsyncpa [#allocation3], 1

</llo_original>
